<compile_context>
chip_gen: v6e
topology: v6e:2x2x1
jax: 0.10.0
libtpu: 0.0.40
codegen_flags: <defaults>
</compile_context>

<pallas_src>
import jax
import jax.numpy as jnp
from jax.experimental import pallas as pl
from jax.experimental.pallas import tpu as pltpu

EPS = 1e-5  # torch.nn.functional.layer_norm default


def _layernorm_kernel(x_ref, gb_ref, o_ref):
    # x_ref: (tile_rows, D), gb_ref: (2, D) [row 0 = gamma, row 1 = beta],
    # o_ref: (tile_rows, D)
    x = x_ref[...].astype(jnp.float32)
    d = x.shape[-1]
    inv_d = jnp.float32(1.0 / d)
    # One-pass statistics (single sweep over the block).
    s = jnp.sum(x, axis=-1, keepdims=True)
    ss = jnp.sum(x * x, axis=-1, keepdims=True)
    mean = s * inv_d
    var = jnp.maximum(ss * inv_d - mean * mean, 0.0)  # clamp: cancellation safety
    inv = jax.lax.rsqrt(var + EPS)
    gb = gb_ref[...].astype(jnp.float32)
    g = gb[0:1, :]
    b = gb[1:2, :]
    o_ref[...] = ((x - mean) * inv * g + b).astype(o_ref.dtype)


def _round_up(n, m):
    return ((n + m - 1) // m) * m


def _tpu_generation_info():
    """Returns (num_tensorcores_per_chip, vmem_limit_bytes, chooser_budget_bytes)."""
    vmem_capacity = 128 << 20
    num_cores = 1
    try:
        info = pltpu.get_tpu_info()
        vmem_capacity = int(getattr(info, "vmem_capacity_bytes", vmem_capacity))
    except Exception:
        pass
    try:
        kind = jax.devices()[0].device_kind.lower()
        if "v7" in kind:
            num_cores = 2
    except Exception:
        pass
    if vmem_capacity <= (64 << 20):
        # 64 MiB/TC VMEM => v7x-class chip: 2 TensorCores, tighter headroom.
        num_cores = max(num_cores, 2)
        vmem_limit = 40 << 20
        budget = 24 << 20
    else:
        # 128 MiB VMEM (v5e/v6e): let blocks grow, keep limit consistent.
        vmem_limit = 64 << 20
        budget = 48 << 20
    return num_cores, vmem_limit, budget


def _choose_tile_rows(n_rows, dim, itemsize, num_cores, budget_bytes):
    # Sublane-packing friendly multiple: 8 for f32, 16 for bf16, 32 for 8-bit.
    sub = max(8, 32 // max(itemsize, 1))
    # Per-row VMEM: double-buffered input + output blocks (x dtype) plus ~2 f32
    # block-sized temporaries for the fused one-pass normalize.
    per_row_bytes = dim * (4 * itemsize + 2 * 4)
    budget_rows = max(sub, budget_bytes // max(per_row_bytes, 1))
    # Bytes-based target: aim for >= ~4 MiB input blocks (amortizes ~0.35 us
    # per-step overhead; HBM roofline fraction plateaus around 2-4 MiB blocks).
    target_rows = max(sub, (4 << 20) // max(dim * itemsize, 1))
    t = min(target_rows, budget_rows, _round_up(n_rows, sub))
    t = max(sub, (t // sub) * sub)
    # Multi-TC chips (v7x): balance the "parallel" grid axis by making the step
    # count a multiple of the core count when there is enough work.
    # Single-TC chips (v5e/v6e): never force a split - the grid is a serial
    # loop there, so splitting one block only adds per-step overhead.
    if num_cores >= 2 and n_rows > num_cores * sub:
        steps = pl.cdiv(n_rows, t)
        steps = _round_up(max(steps, num_cores), num_cores)
        t = max(sub, _round_up(pl.cdiv(n_rows, steps), sub))
    return int(t)


def layer_norm(x, gamma, beta, *, tile_rows=None):
    """x: (..., D); gamma, beta: (D,). Returns same shape/dtype as x."""
    orig_shape = x.shape
    D = orig_shape[-1]
    x2 = x.reshape(-1, D)
    R = x2.shape[0]
    itemsize = jnp.dtype(x2.dtype).itemsize

    num_cores, vmem_limit, budget = _tpu_generation_info()
    if tile_rows is None:
        tile_rows = _choose_tile_rows(R, D, itemsize, num_cores, budget)
    grid = pl.cdiv(R, tile_rows)

    # Stack gamma/beta into one (2, D) operand: one DMA descriptor + one
    # double-buffer pair instead of two.
    gb = jnp.concatenate([gamma.reshape(1, D), beta.reshape(1, D)], axis=0)

    cost = pl.CostEstimate(
        flops=8 * R * D,
        transcendentals=R,  # one rsqrt per row
        bytes_accessed=2 * R * D * itemsize + 2 * D * jnp.dtype(gb.dtype).itemsize,
    )

    out = pl.pallas_call(
        _layernorm_kernel,
        out_shape=jax.ShapeDtypeStruct((R, D), x.dtype),
        grid_spec=pltpu.PrefetchScalarGridSpec(
            num_scalar_prefetch=0,
            grid=(grid,),
            in_specs=[
                pl.BlockSpec((tile_rows, D), lambda i: (i, 0)),
                pl.BlockSpec((2, D), lambda i: (0, 0)),
            ],
            out_specs=pl.BlockSpec((tile_rows, D), lambda i: (i, 0)),
        ),
        compiler_params=pltpu.CompilerParams(
            dimension_semantics=("parallel",),
            vmem_limit_bytes=vmem_limit,
        ),
        cost_estimate=cost,
    )(x2, gb)

    return out.reshape(orig_shape)


def reference_layer_norm(x, gamma, beta):
    xf = x.astype(jnp.float32)
    mean = jnp.mean(xf, axis=-1, keepdims=True)
    var = jnp.mean((xf - mean) ** 2, axis=-1, keepdims=True)
    y = (xf - mean) * jax.lax.rsqrt(var + EPS)
    return (y * gamma.astype(jnp.float32) + beta.astype(jnp.float32)).astype(x.dtype)


if __name__ == "__main__":
    key = jax.random.PRNGKey(0)
    batch, seq, dim = 2, 8, 256

    x = jax.random.normal(key, (batch, seq, dim), dtype=jnp.float32)
    # Module __init__: gamma = ones(dim) (Parameter), beta = zeros(dim) (buffer, bias=False)
    gamma = jnp.ones((dim,), dtype=jnp.float32)
    beta = jnp.zeros((dim,), dtype=jnp.float32)

    out = layer_norm(x, gamma, beta)
    out = jax.block_until_ready(out)

    ref = reference_layer_norm(x, gamma, beta)
    assert out.shape == x.shape and out.dtype == x.dtype
    assert jnp.allclose(out, ref, atol=1e-5, rtol=1e-5), "mismatch vs reference"

    # Ragged row count: exercises the masked partial final block.
    x_odd = jax.random.normal(jax.random.PRNGKey(1), (3, 5, dim), dtype=jnp.float32)
    out_odd = jax.block_until_ready(layer_norm(x_odd, gamma, beta))
    ref_odd = reference_layer_norm(x_odd, gamma, beta)
    assert jnp.allclose(out_odd, ref_odd, atol=1e-5, rtol=1e-5), "ragged mismatch"

    # bf16 input: validates the one-pass E[x^2]-E[x]^2 variance (f32 accumulation,
    # clamped) against the two-pass reference at reduced precision.
    x_bf = jax.random.normal(jax.random.PRNGKey(2), (2, 8, dim)).astype(jnp.bfloat16)
    out_bf = jax.block_until_ready(layer_norm(x_bf, gamma, beta))
    ref_bf = reference_layer_norm(x_bf, gamma, beta)
    assert out_bf.dtype == jnp.bfloat16
    assert jnp.allclose(out_bf.astype(jnp.float32), ref_bf.astype(jnp.float32),
                        atol=5e-2, rtol=5e-2), "bf16 mismatch"

    print("KERNEL_OK")
</pallas_src>

<mosaic_0001>
module attributes {stable_mosaic.version = 11 : i64} {
  func.func @_layernorm_kernel(%arg0: i32, %arg1: memref<16x256xf32, #tpu.memory_space<vmem>>, %arg2: memref<2x256xf32, #tpu.memory_space<vmem>>, %arg3: memref<16x256xf32, #tpu.memory_space<vmem>>) attributes {dimension_semantics = [#tpu.dimension_semantics<parallel>], iteration_bounds = array<i64: 1>, scalar_prefetch = 0 : i64, scratch_operands = 0 : i64, tpu.core_type = #tpu.core_type<tc>, window_params = [{transform_indices = @transform_0, window_bounds = array<i64: 16, 256>}, {pipeline_mode = #tpu.pipeline_mode<synchronous>, transform_indices = @transform_1, window_bounds = array<i64: 2, 256>}, {transform_indices = @transform_2, window_bounds = array<i64: 16, 256>}]} {
    %c0 = arith.constant 0 : index
    %c0_0 = arith.constant 0 : index
    %0 = vector.load %arg1[%c0, %c0_0] : memref<16x256xf32, #tpu.memory_space<vmem>>, vector<16x256xf32>
    %cst = arith.constant dense<0.000000e+00> : vector<16xf32>
    %1 = vector.multi_reduction <add>, %0, %cst [1] : vector<16x256xf32> to vector<16xf32>
    %2 = vector.shape_cast %1 : vector<16xf32> to vector<16x1xf32>
    %3 = arith.mulf %0, %0 : vector<16x256xf32>
    %cst_1 = arith.constant dense<0.000000e+00> : vector<16xf32>
    %4 = vector.multi_reduction <add>, %3, %cst_1 [1] : vector<16x256xf32> to vector<16xf32>
    %5 = vector.shape_cast %4 : vector<16xf32> to vector<16x1xf32>
    %cst_2 = arith.constant 3.906250e-03 : f32
    %6 = vector.broadcast %cst_2 : f32 to vector<16x1xf32>
    %7 = arith.mulf %2, %6 : vector<16x1xf32>
    %cst_3 = arith.constant 3.906250e-03 : f32
    %8 = vector.broadcast %cst_3 : f32 to vector<16x1xf32>
    %9 = arith.mulf %5, %8 : vector<16x1xf32>
    %10 = arith.mulf %7, %7 : vector<16x1xf32>
    %11 = arith.subf %9, %10 : vector<16x1xf32>
    %cst_4 = arith.constant 0.000000e+00 : f32
    %12 = vector.broadcast %cst_4 : f32 to vector<16x1xf32>
    %13 = arith.maximumf %11, %12 : vector<16x1xf32>
    %cst_5 = arith.constant 9.99999974E-6 : f32
    %14 = vector.broadcast %cst_5 : f32 to vector<16x1xf32>
    %15 = arith.addf %13, %14 : vector<16x1xf32>
    %16 = math.rsqrt %15 : vector<16x1xf32>
    %c0_6 = arith.constant 0 : index
    %c0_7 = arith.constant 0 : index
    %17 = vector.load %arg2[%c0_6, %c0_7] : memref<2x256xf32, #tpu.memory_space<vmem>>, vector<2x256xf32>
    %18 = vector.extract_strided_slice %17 {offsets = [0, 0], sizes = [1, 256], strides = [1, 1]} : vector<2x256xf32> to vector<1x256xf32>
    %19 = vector.extract_strided_slice %17 {offsets = [1, 0], sizes = [1, 256], strides = [1, 1]} : vector<2x256xf32> to vector<1x256xf32>
    %20 = vector.broadcast %7 : vector<16x1xf32> to vector<16x256xf32>
    %21 = arith.subf %0, %20 : vector<16x256xf32>
    %22 = vector.broadcast %16 : vector<16x1xf32> to vector<16x256xf32>
    %23 = arith.mulf %21, %22 : vector<16x256xf32>
    %24 = vector.broadcast %18 : vector<1x256xf32> to vector<16x256xf32>
    %25 = arith.mulf %23, %24 : vector<16x256xf32>
    %26 = vector.broadcast %19 : vector<1x256xf32> to vector<16x256xf32>
    %27 = arith.addf %25, %26 : vector<16x256xf32>
    %c0_8 = arith.constant 0 : index
    %c0_9 = arith.constant 0 : index
    %28 = vector.load %arg3[%c0_8, %c0_9] : memref<16x256xf32, #tpu.memory_space<vmem>>, vector<16x256xf32>
    tpu.vector_store %arg3[%c0_8, %c0_9], %27 {strides = array<i32>} : memref<16x256xf32, #tpu.memory_space<vmem>>, vector<16x256xf32>,
    return
  }
  func.func @transform_0(%arg0: i32) -> (i32, i32) {
    %c0_i32 = arith.constant 0 : i32
    %c0_i32_0 = arith.constant 0 : i32
    return %arg0, %c0_i32 : i32, i32
  }
  func.func @transform_1(%arg0: i32) -> (i32, i32) {
    %c0_i32 = arith.constant 0 : i32
    %c0_i32_0 = arith.constant 0 : i32
    %c0_i32_1 = arith.constant 0 : i32
    return %c0_i32, %c0_i32_0 : i32, i32
  }
  func.func @transform_2(%arg0: i32) -> (i32, i32) {
    %c0_i32 = arith.constant 0 : i32
    %c0_i32_0 = arith.constant 0 : i32
    return %arg0, %c0_i32 : i32, i32
  }
}

</mosaic_0001>

<llo_original>
// kernel: tpu_custom_call.1
$region0: #{tpu_custom_call.1}
  #allocation0 [shape = 'u32[]', space=smem, size = 0x4, offset = 0x4, fixed_abs, tag = 'smem constant byte address 0x4 - core index']
  #allocation1 [shape = 'u32[144,128]{1,0:T(1,128)}', space=vmem, size = 0x12000, scoped, tag = 'internal scratch']
  %s0 = inlined_call_operand.hbm [shape: f32[16,256], index: 0, kind: input, shape index: {}]
  %s1 = inlined_call_operand.hbm [shape: f32[2,256], index: 1, kind: input, shape index: {}]
  %s2 = inlined_call_operand.hbm [shape: f32[16,256], index: 2, kind: output, shape index: {}]
  %s3 = sld [smem:[#allocation0]]
  $region26: #{tpu_custom_call.1} parent=0
    _
  %s5 = ssub.s32 1, %s3
  %s6 = scalar_select 0, %s5, %s3
  $region1: #{tpu_custom_call.1} parent=0
    #allocation2 [shape = 'u8[16384]{0}', space=vmem, size = 0x4000, scoped, tag = 'input window, operand 0, single buffered']
    #allocation3 [shape = 's32[1]{0}', space=sflag, size = 0x4, scoped, tag = 'scoped memory for tpu_custom_call.1']
    #allocation4 [shape = 's32[1]{0}', space=sflag, size = 0x4, scoped, tag = 'scoped memory for tpu_custom_call.1']
    #allocation5 [shape = 'u8[2048]{0}', space=vmem, size = 0x800, scoped, tag = 'input window, operand 1, single buffered']
    #allocation6 [shape = 's32[1]{0}', space=sflag, size = 0x4, scoped, tag = 'scoped memory for tpu_custom_call.1']
    #allocation7 [shape = 'u8[16384]{0}', space=vmem, size = 0x4000, scoped, tag = 'output window, operand 0, single buffered']
    %7 = vsyncpa [#allocation3], 0
    %8 = vsyncpa [#allocation6], 0
    %9 = vsyncpa [#allocation4], 0
    // Predicated region
    $region2: #{tpu_custom_call.1} parent=1 // pred_check
      _
    $region3: #{tpu_custom_call.1} parent=1 // pred_check_branch
      %11 = sbr.rel (0) target = $region5
    $region4: #{tpu_custom_call.1} parent=1 // pred_region
      %s13 = ssub.s32 512, 512
      %14 = vsyncadd [#allocation3], %s13
      %s15 = sshll.u32 [#allocation2], 4
      %s16 = int_to_ptr.vmem [resolvable:$true] %s15
      %21 = dma.hbm_to_vmem [thread:$0]  %s0, 512, %s16, [#allocation3], 256, 256, 16
    $region5: #{tpu_custom_call.1} parent=1 // pred_fallthru
      _
    // Predicated region
    $region6: #{tpu_custom_call.1} parent=1 // pred_check
      _
    $region7: #{tpu_custom_call.1} parent=1 // pred_check_branch
      %23 = sbr.rel (0) target = $region9
    $region8: #{tpu_custom_call.1} parent=1 // pred_region
      %s25 = ssub.s32 64, 64
      %26 = vsyncadd [#allocation6], %s25
      %s28 = sshll.u32 [#allocation5], 4
      %s29 = int_to_ptr.vmem [resolvable:$true] %s28
      %31 = dma.hbm_to_vmem [thread:$0]  %s1, 64, %s29, [#allocation6]
    $region9: #{tpu_custom_call.1} parent=1 // pred_fallthru
      _
    // Predicated region
    $region10: #{tpu_custom_call.1} parent=1 // pred_check
      _
    $region11: #{tpu_custom_call.1} parent=1 // pred_check_branch
      %33 = sbr.rel (0) target = $region13
    $region12: #{tpu_custom_call.1} parent=1 // pred_region
      %34 = dma.done [#allocation3], 512
    $region13: #{tpu_custom_call.1} parent=1 // pred_fallthru
      _
    // Predicated region
    $region14: #{tpu_custom_call.1} parent=1 // pred_check
      _
    $region15: #{tpu_custom_call.1} parent=1 // pred_check_branch
      %36 = sbr.rel (0) target = $region17
    $region16: #{tpu_custom_call.1} parent=1 // pred_region
      %37 = dma.done [#allocation6], 64
    $region17: #{tpu_custom_call.1} parent=1 // pred_fallthru
      _
    %v38 = vld [vmem:[#allocation2] sm:$0xff]
    %v39 = vld [vmem:[#allocation2 + $0x8] sm:$0xff]
    %v40 = vld [vmem:[#allocation2 + $0x10] sm:$0xff]
    %v41 = vld [vmem:[#allocation2 + $0x18] sm:$0xff]
    %v42 = vadd.f32 %v38, %v39
    %43 = vadd.xlane.f32.xlu0 %v42
    %v44 = vpop.xlane.xlu0 %43
    %v45 = vadd.f32 %v40, %v41
    %46 = vadd.xlane.f32.xlu0 %v45
    %v47 = vpop.xlane.xlu0 %46
    %v48 = vmul.f32 %v38, %v38
    %v49 = vmul.f32 %v39, %v39
    %v50 = vmul.f32 %v40, %v40
    %v51 = vmul.f32 %v41, %v41
    %v52 = vadd.f32 %v48, %v49
    %53 = vadd.xlane.f32.xlu0 %v52
    %v54 = vpop.xlane.xlu0 %53
    %v55 = vadd.f32 %v50, %v51
    %56 = vadd.xlane.f32.xlu0 %v55
    %v57 = vpop.xlane.xlu0 %56
    %v58 = vmul.f32 %v44, 0.00390625
    %v59 = vmul.f32 %v47, 0.00390625
    %v60 = vmul.f32 %v54, 0.00390625
    %v61 = vmul.f32 %v57, 0.00390625
    %v62 = vmul.f32 %v58, %v58
    %v63 = vmul.f32 %v59, %v59
    %v64 = vsub.f32 %v60, %v62
    %v65 = vsub.f32 %v61, %v63
    %v66 = vmax.f32 %v64, 0.0
    %v67 = vmax.f32 %v65, 0.0
    %v68 = vadd.f32 %v66, 1e-05
    %v69 = vadd.f32 %v67, 1e-05
    %v70 = vrsqrt.pop %v68
    %v71 = vrsqrt.pop %v69
    %v72 = vld [vmem:[#allocation5] sm:$0xf]
    %v73 = vsub.f32 %v38, %v58
    %v74 = vsub.f32 %v39, %v58
    %v75 = vsub.f32 %v40, %v59
    %v76 = vsub.f32 %v41, %v59
    %v77 = vmul.f32 %v73, %v70
    %v78 = vmul.f32 %v74, %v70
    %v79 = vmul.f32 %v75, %v71
    %v80 = vmul.f32 %v76, %v71
    %v82 = vlaneseq
    %v83 = vshrl.u32 %v82, 7
    %v84 = vsub.s32 0, %v83
    %v85 = vrot.slane %v72, %v84
    %v86 = vlaneseq
    %v87 = vshrl.u32 %v86, 7
    %v88 = vsub.s32 2, %v87
    %v89 = vrot.slane %v72, %v88
    %v92 = vlaneseq
    %v93 = vshrl.u32 %v92, 7
    %v94 = vsub.s32 0, %v93
    %v95 = vrot.slane %v85, %v94
    %v96 = vlaneseq
    %v97 = vshrl.u32 %v96, 7
    %v98 = vsub.s32 0, %v97
    %v99 = vrot.slane %v89, %v98
    %v100 = vmul.f32 %v77, %v95
    %v101 = vmul.f32 %v78, %v99
    %v102 = vmul.f32 %v79, %v95
    %v103 = vmul.f32 %v80, %v99
    %v104 = vlaneseq
    %v105 = vshrl.u32 %v104, 7
    %v106 = vsub.s32 1, %v105
    %v107 = vrot.slane %v72, %v106
    %v108 = vlaneseq
    %v109 = vshrl.u32 %v108, 7
    %v110 = vsub.s32 3, %v109
    %v111 = vrot.slane %v72, %v110
    %v114 = vlaneseq
    %v115 = vshrl.u32 %v114, 7
    %v116 = vsub.s32 1, %v115
    %v117 = vrot.slane %v107, %v116
    %v118 = vlaneseq
    %v119 = vshrl.u32 %v118, 7
    %v120 = vsub.s32 1, %v119
    %v121 = vrot.slane %v111, %v120
    %v122 = vadd.f32 %v100, %v117
    %v123 = vadd.f32 %v101, %v121
    %v124 = vadd.f32 %v102, %v117
    %v125 = vadd.f32 %v103, %v121
    %126 = vst [vmem:[#allocation7] sm:$0xff] %v122
    %127 = vst [vmem:[#allocation7 + $0x8] sm:$0xff] %v123
    %128 = vst [vmem:[#allocation7 + $0x10] sm:$0xff] %v124
    %129 = vst [vmem:[#allocation7 + $0x18] sm:$0xff] %v125
    // Predicated region
    $region18: #{tpu_custom_call.1} parent=1 // pred_check
      _
    $region19: #{tpu_custom_call.1} parent=1 // pred_check_branch
      %131 = sbr.rel (0) target = $region21
    $region20: #{tpu_custom_call.1} parent=1 // pred_region
      %s133 = ssub.s32 512, 512
      %134 = vsyncadd [#allocation4], %s133
      %s135 = sshll.u32 [#allocation7], 4
      %s136 = int_to_ptr.vmem [resolvable:$true] %s135
      %141 = dma.vmem_to_hbm [thread:$0]  %s136, 512, %s2, [#allocation4], 256, 256, 16
    $region21: #{tpu_custom_call.1} parent=1 // pred_fallthru
      _
    // Predicated region
    $region22: #{tpu_custom_call.1} parent=1 // pred_check
      _
    $region23: #{tpu_custom_call.1} parent=1 // pred_check_branch
      %143 = sbr.rel (0) target = $region25
    $region24: #{tpu_custom_call.1} parent=1 // pred_region
      %144 = dma.done [#allocation4], 512
    $region25: #{tpu_custom_call.1} parent=1 // pred_fallthru
      _
    %145 = vsyncpa [#allocation3], 1
    %146 = vsyncpa [#allocation6], 1
    %147 = vsyncpa [#allocation4], 1

</llo_original>
